<compile_context>
chip_gen: v6e
topology: v6e:2x2x1
jax: 0.10.0
libtpu: 0.0.40
codegen_flags: <defaults>
</compile_context>

<pallas_src>
import jax
import jax.numpy as jnp
from jax import lax
from jax.experimental import pallas as pl
from jax.experimental.pallas import tpu as pltpu


def _make_conv_kernel(H, W, Cin, Cout, b_blk):
    """3x3 / stride-1 / pad-1 conv + bias + ReLU over a block of b_blk images.

    Channels-first, flat-spatial layout: lane dim = H*W (lane-dense, unmasked
    stores); shifts via XLU rolls; zero padding via hoisted boundary masks.
    """
    HW = H * W

    def kernel(x_ref, w_ref, b_ref, o_ref):
        # x_ref : (b_blk, Cin, HW)   flattened NCHW images
        # w_ref : (Cout, 9*Cin)      tap-major columns: (kh*3+kw)*Cin + ci
        # b_ref : (Cout, 1)          conv bias
        # o_ref : (b_blk, Cout, HW)  lane-dense output
        wv = w_ref[...]                                          # (Cout, 9*Cin)
        # Bias-initialized accumulator template (hoisted; reused per image).
        acc0 = jnp.broadcast_to(b_ref[...], (Cout, HW)).astype(jnp.float32)

        # Hoisted boundary masks (shared by every tap and every image).
        pos = lax.broadcasted_iota(jnp.int32, (1, HW), 1)
        col = pos % W
        not_left = col != 0                 # needed when dx = -1
        not_right = col != (W - 1)          # needed when dx = +1
        not_top = pos >= W                  # needed when dy = -1
        not_bot = pos < (H - 1) * W         # needed when dy = +1

        # Combined per-tap masks, built once (None for the center tap).
        taps = []
        for dy in (-1, 0, 1):
            for dx in (-1, 0, 1):
                m = None
                if dy == -1:
                    m = not_top
                elif dy == 1:
                    m = not_bot
                if dx == -1:
                    m = not_left if m is None else jnp.logical_and(m, not_left)
                elif dx == 1:
                    m = not_right if m is None else jnp.logical_and(m, not_right)
                taps.append((dy, dx, m))

        def one_image(i, carry):
            xi = x_ref[i]                                        # (Cin, HW)
            acc = acc0
            for t, (dy, dx, m) in enumerate(taps):
                shift = dy * W + dx
                if shift == 0:
                    win = xi
                else:
                    # jnp.roll(xi, -shift) semantics: win[p] = xi[(p+shift) % HW];
                    # the wrapped/out-of-range positions are zeroed by the mask.
                    win = pltpu.roll(xi, shift=(-shift) % HW, axis=1)
                if m is not None:
                    win = jnp.where(m, win, 0.0)
                # K=3 contraction as VPU broadcast FMAs (tiny K/N -> skip MXU).
                for ci in range(Cin):
                    c = t * Cin + ci
                    acc = acc + wv[:, c:c + 1] * win[ci:ci + 1, :]
            o_ref[i] = jnp.maximum(acc, 0.0).astype(o_ref.dtype)
            return carry

        lax.fori_loop(0, b_blk, one_image, 0)

    return kernel


def prepare_params(weight, conv_bias):
    """One-time Conv2d parameter repack (call at load time, not per forward)."""
    Cout, Cin, KH, KW = weight.shape
    assert (KH, KW) == (3, 3)
    # (Cout, Cin, 3, 3) -> (Cout, 3, 3, Cin) -> (Cout, 9*Cin), tap-major columns.
    w_flat = jnp.transpose(jnp.asarray(weight, jnp.float32),
                           (0, 2, 3, 1)).reshape(Cout, 9 * Cin)
    b2d = jnp.asarray(conv_bias, jnp.float32).reshape(Cout, 1)
    return w_flat, b2d


def conv3x3_bias_relu_nchw(x_nchw, w_flat, b2d, *, max_images_per_block=32):
    """x_nchw: (N, Cin, H, W) f32; w_flat: (Cout, 9*Cin); b2d: (Cout, 1)."""
    N, Cin, H, W = x_nchw.shape
    Cout = w_flat.shape[0]
    HW = H * W

    # Images per grid step: big enough to amortize per-step overhead and get
    # large DMAs, but keep the grid length >= 2 when N >= 2 so both v7x
    # TensorCores get work.  Per-image working set is ~11 KB, so even the
    # largest block double-buffers comfortably in every generation's VMEM.
    b_blk = max(1, min(max_images_per_block, -(-N // 2)))
    grid = -(-N // b_blk)
    n_pad = grid * b_blk - N

    # Free contiguous reshape (no transpose, no spatial pad round-trip).
    x_flat = jnp.asarray(x_nchw, jnp.float32).reshape(N, Cin, HW)
    if n_pad:
        x_flat = jnp.concatenate(
            [x_flat, jnp.zeros((n_pad, Cin, HW), jnp.float32)], axis=0)

    kernel = _make_conv_kernel(H, W, Cin, Cout, b_blk)

    out_flat = pl.pallas_call(
        kernel,
        out_shape=jax.ShapeDtypeStruct((grid * b_blk, Cout, HW), jnp.float32),
        grid_spec=pltpu.PrefetchScalarGridSpec(
            num_scalar_prefetch=0,
            grid=(grid,),
            in_specs=[
                pl.BlockSpec((b_blk, Cin, HW), lambda g: (g, 0, 0)),
                pl.BlockSpec((Cout, 9 * Cin), lambda g: (0, 0)),
                pl.BlockSpec((Cout, 1), lambda g: (0, 0)),
            ],
            out_specs=pl.BlockSpec((b_blk, Cout, HW), lambda g: (g, 0, 0)),
        ),
        compiler_params=pltpu.CompilerParams(
            dimension_semantics=("parallel",)),
    )(x_flat, w_flat, b2d)

    out = out_flat[:N] if n_pad else out_flat
    return out.reshape(N, Cout, H, W)


def model_forward(x_nchw, w_flat, b2d, bias=None):
    """Pallas equivalent of Model.forward (NCHW in / NCHW out)."""
    # TODO(synk): external `bias` branch (v1 + bias before ReLU) not implemented;
    # the reference script's bias=torch.zeros(8) does not broadcast against
    # (N, 8, H, W) in torch anyway, so only the bias=None path is supported.
    assert bias is None
    return conv3x3_bias_relu_nchw(x_nchw, w_flat, b2d)


if __name__ == "__main__":
    key = jax.random.PRNGKey(0)
    kx, kw, kb = jax.random.split(key, 3)

    N, Cin, H, W = 4, 3, 16, 16      # module requires Cin=3
    Cout, K = 8, 3

    x = jax.random.normal(kx, (N, Cin, H, W), dtype=jnp.float32)
    fan_in = Cin * K * K
    weight = jax.random.normal(kw, (Cout, Cin, K, K), dtype=jnp.float32) / jnp.sqrt(fan_in)
    conv_bias = jax.random.normal(kb, (Cout,), dtype=jnp.float32) * 0.1

    # Parameter repack happens once, outside the jitted forward.
    w_flat, b2d = prepare_params(weight, conv_bias)

    fwd = jax.jit(model_forward)
    out = jax.block_until_ready(fwd(x, w_flat, b2d))

    # Reference check with XLA conv (NCHW).
    ref = lax.conv_general_dilated(
        x, weight, window_strides=(1, 1), padding=((1, 1), (1, 1)),
        dimension_numbers=("NCHW", "OIHW", "NCHW"))
    ref = jnp.maximum(ref + conv_bias.reshape(1, Cout, 1, 1), 0.0)

    assert out.shape == (N, Cout, H, W)
    assert jnp.allclose(out, ref, rtol=1e-4, atol=1e-4)
    print("KERNEL_OK")
</pallas_src>

<mosaic_0001>
module attributes {stable_mosaic.version = 11 : i64} {
  func.func @kernel(%arg0: i32, %arg1: memref<2x3x256xf32, #tpu.memory_space<vmem>>, %arg2: memref<8x27xf32, #tpu.memory_space<vmem>>, %arg3: memref<8x1xf32, #tpu.memory_space<vmem>>, %arg4: memref<2x8x256xf32, #tpu.memory_space<vmem>>) attributes {dimension_semantics = [#tpu.dimension_semantics<parallel>], iteration_bounds = array<i64: 2>, scalar_prefetch = 0 : i64, scratch_operands = 0 : i64, tpu.core_type = #tpu.core_type<tc>, window_params = [{transform_indices = @transform_0, window_bounds = array<i64: 2, 3, 256>}, {pipeline_mode = #tpu.pipeline_mode<synchronous>, transform_indices = @transform_1, window_bounds = array<i64: 8, 27>}, {pipeline_mode = #tpu.pipeline_mode<synchronous>, transform_indices = @transform_2, window_bounds = array<i64: 8, 1>}, {transform_indices = @transform_3, window_bounds = array<i64: 2, 8, 256>}]} {
    %c0 = arith.constant 0 : index
    %c0_0 = arith.constant 0 : index
    %0 = vector.load %arg2[%c0, %c0_0] : memref<8x27xf32, #tpu.memory_space<vmem>>, vector<8x27xf32>
    %c0_1 = arith.constant 0 : index
    %c0_2 = arith.constant 0 : index
    %1 = vector.load %arg3[%c0_1, %c0_2] : memref<8x1xf32, #tpu.memory_space<vmem>>, vector<8x1xf32>
    %2 = vector.shape_cast %1 : vector<8x1xf32> to vector<8x1xf32>
    %3 = vector.broadcast %2 : vector<8x1xf32> to vector<8x256xf32>
    %4 = tpu.iota {dimensions = array<i32: 1>} : vector<1x256xi32>
    %c16_i32 = arith.constant 16 : i32
    %c0_i32 = arith.constant 0 : i32
    %5 = arith.cmpi eq, %c16_i32, %c0_i32 : i32
    %c1_i32 = arith.constant 1 : i32
    %6 = arith.select %5, %c1_i32, %c16_i32 : i32
    %7 = vector.broadcast %6 : i32 to vector<1x256xi32>
    %8 = arith.remsi %4, %7 : vector<1x256xi32>
    %c0_i32_3 = arith.constant 0 : i32
    %9 = vector.broadcast %c0_i32_3 : i32 to vector<1x256xi32>
    %10 = arith.cmpi ne, %8, %9 : vector<1x256xi32>
    %c0_i32_4 = arith.constant 0 : i32
    %11 = vector.broadcast %c0_i32_4 : i32 to vector<1x256xi32>
    %12 = arith.cmpi slt, %8, %11 : vector<1x256xi32>
    %c0_i32_5 = arith.constant 0 : i32
    %13 = arith.cmpi slt, %6, %c0_i32_5 : i32
    %14 = vector.broadcast %13 : i1 to vector<1x256xi1>
    %15 = vector.broadcast %14 : vector<1x256xi1> to vector<1x256xi1>
    %16 = arith.xori %12, %15 : vector<1x256xi1>
    %17 = arith.andi %16, %10 : vector<1x256xi1>
    %18 = vector.broadcast %6 : i32 to vector<1x256xi32>
    %19 = arith.addi %8, %18 : vector<1x256xi32>
    %20 = arith.select %17, %19, %8 : vector<1x256xi1>, vector<1x256xi32>
    %c0_i32_6 = arith.constant 0 : i32
    %21 = vector.broadcast %c0_i32_6 : i32 to vector<1x256xi32>
    %22 = arith.cmpi ne, %20, %21 : vector<1x256xi32>
    %c15_i32 = arith.constant 15 : i32
    %23 = vector.broadcast %c15_i32 : i32 to vector<1x256xi32>
    %24 = arith.cmpi ne, %20, %23 : vector<1x256xi32>
    %c16_i32_7 = arith.constant 16 : i32
    %25 = vector.broadcast %c16_i32_7 : i32 to vector<1x256xi32>
    %26 = arith.cmpi sge, %4, %25 : vector<1x256xi32>
    %c240_i32 = arith.constant 240 : i32
    %27 = vector.broadcast %c240_i32 : i32 to vector<1x256xi32>
    %28 = arith.cmpi slt, %4, %27 : vector<1x256xi32>
    %29 = arith.andi %26, %22 : vector<1x256xi1>
    %30 = arith.andi %26, %24 : vector<1x256xi1>
    %31 = arith.andi %28, %22 : vector<1x256xi1>
    %32 = arith.andi %28, %24 : vector<1x256xi1>
    %c0_i32_8 = arith.constant 0 : i32
    %c2_i32 = arith.constant 2 : i32
    %33 = arith.addi %c0_i32_8, %c2_i32 : i32
    %c1_i32_9 = arith.constant 1 : i32
    scf.for %arg5 = %c0_i32_8 to %33 step %c1_i32_9  : i32 {
      %34 = arith.index_cast %arg5 : i32 to index
      %c0_11 = arith.constant 0 : index
      %c0_12 = arith.constant 0 : index
      %35 = vector.load %arg1[%34, %c0_11, %c0_12] : memref<2x3x256xf32, #tpu.memory_space<vmem>>, vector<1x3x256xf32>
      %36 = vector.shape_cast %35 : vector<1x3x256xf32> to vector<3x256xf32>
      %c17_i32 = arith.constant 17 : i32
      %37 = tpu.dynamic_rotate %36 by %c17_i32 dim 1 : vector<3x256xf32>, i32 -> vector<3x256xf32>
      %cst = arith.constant 0.000000e+00 : f32
      %38 = vector.shape_cast %29 : vector<1x256xi1> to vector<1x256xi1>
      %39 = vector.broadcast %38 : vector<1x256xi1> to vector<3x256xi1>
      %40 = vector.broadcast %cst : f32 to vector<3x256xf32>
      %41 = arith.select %39, %37, %40 : vector<3x256xi1>, vector<3x256xf32>
      %42 = vector.extract_strided_slice %0 {offsets = [0, 0], sizes = [8, 1], strides = [1, 1]} : vector<8x27xf32> to vector<8x1xf32>
      %43 = vector.extract_strided_slice %41 {offsets = [0, 0], sizes = [1, 256], strides = [1, 1]} : vector<3x256xf32> to vector<1x256xf32>
      %44 = vector.broadcast %42 : vector<8x1xf32> to vector<8x256xf32>
      %45 = vector.broadcast %43 : vector<1x256xf32> to vector<8x256xf32>
      %46 = arith.mulf %44, %45 : vector<8x256xf32>
      %47 = arith.addf %3, %46 : vector<8x256xf32>
      %48 = vector.extract_strided_slice %0 {offsets = [0, 1], sizes = [8, 1], strides = [1, 1]} : vector<8x27xf32> to vector<8x1xf32>
      %49 = vector.extract_strided_slice %41 {offsets = [1, 0], sizes = [1, 256], strides = [1, 1]} : vector<3x256xf32> to vector<1x256xf32>
      %50 = vector.broadcast %48 : vector<8x1xf32> to vector<8x256xf32>
      %51 = vector.broadcast %49 : vector<1x256xf32> to vector<8x256xf32>
      %52 = arith.mulf %50, %51 : vector<8x256xf32>
      %53 = arith.addf %47, %52 : vector<8x256xf32>
      %54 = vector.extract_strided_slice %0 {offsets = [0, 2], sizes = [8, 1], strides = [1, 1]} : vector<8x27xf32> to vector<8x1xf32>
      %55 = vector.extract_strided_slice %41 {offsets = [2, 0], sizes = [1, 256], strides = [1, 1]} : vector<3x256xf32> to vector<1x256xf32>
      %56 = vector.broadcast %54 : vector<8x1xf32> to vector<8x256xf32>
      %57 = vector.broadcast %55 : vector<1x256xf32> to vector<8x256xf32>
      %58 = arith.mulf %56, %57 : vector<8x256xf32>
      %59 = arith.addf %53, %58 : vector<8x256xf32>
      %c16_i32_13 = arith.constant 16 : i32
      %60 = tpu.dynamic_rotate %36 by %c16_i32_13 dim 1 : vector<3x256xf32>, i32 -> vector<3x256xf32>
      %cst_14 = arith.constant 0.000000e+00 : f32
      %61 = vector.shape_cast %26 : vector<1x256xi1> to vector<1x256xi1>
      %62 = vector.broadcast %61 : vector<1x256xi1> to vector<3x256xi1>
      %63 = vector.broadcast %cst_14 : f32 to vector<3x256xf32>
      %64 = arith.select %62, %60, %63 : vector<3x256xi1>, vector<3x256xf32>
      %65 = vector.extract_strided_slice %0 {offsets = [0, 3], sizes = [8, 1], strides = [1, 1]} : vector<8x27xf32> to vector<8x1xf32>
      %66 = vector.extract_strided_slice %64 {offsets = [0, 0], sizes = [1, 256], strides = [1, 1]} : vector<3x256xf32> to vector<1x256xf32>
      %67 = vector.broadcast %65 : vector<8x1xf32> to vector<8x256xf32>
      %68 = vector.broadcast %66 : vector<1x256xf32> to vector<8x256xf32>
      %69 = arith.mulf %67, %68 : vector<8x256xf32>
      %70 = arith.addf %59, %69 : vector<8x256xf32>
      %71 = vector.extract_strided_slice %0 {offsets = [0, 4], sizes = [8, 1], strides = [1, 1]} : vector<8x27xf32> to vector<8x1xf32>
      %72 = vector.extract_strided_slice %64 {offsets = [1, 0], sizes = [1, 256], strides = [1, 1]} : vector<3x256xf32> to vector<1x256xf32>
      %73 = vector.broadcast %71 : vector<8x1xf32> to vector<8x256xf32>
      %74 = vector.broadcast %72 : vector<1x256xf32> to vector<8x256xf32>
      %75 = arith.mulf %73, %74 : vector<8x256xf32>
      %76 = arith.addf %70, %75 : vector<8x256xf32>
      %77 = vector.extract_strided_slice %0 {offsets = [0, 5], sizes = [8, 1], strides = [1, 1]} : vector<8x27xf32> to vector<8x1xf32>
      %78 = vector.extract_strided_slice %64 {offsets = [2, 0], sizes = [1, 256], strides = [1, 1]} : vector<3x256xf32> to vector<1x256xf32>
      %79 = vector.broadcast %77 : vector<8x1xf32> to vector<8x256xf32>
      %80 = vector.broadcast %78 : vector<1x256xf32> to vector<8x256xf32>
      %81 = arith.mulf %79, %80 : vector<8x256xf32>
      %82 = arith.addf %76, %81 : vector<8x256xf32>
      %c15_i32_15 = arith.constant 15 : i32
      %83 = tpu.dynamic_rotate %36 by %c15_i32_15 dim 1 : vector<3x256xf32>, i32 -> vector<3x256xf32>
      %cst_16 = arith.constant 0.000000e+00 : f32
      %84 = vector.shape_cast %30 : vector<1x256xi1> to vector<1x256xi1>
      %85 = vector.broadcast %84 : vector<1x256xi1> to vector<3x256xi1>
      %86 = vector.broadcast %cst_16 : f32 to vector<3x256xf32>
      %87 = arith.select %85, %83, %86 : vector<3x256xi1>, vector<3x256xf32>
      %88 = vector.extract_strided_slice %0 {offsets = [0, 6], sizes = [8, 1], strides = [1, 1]} : vector<8x27xf32> to vector<8x1xf32>
      %89 = vector.extract_strided_slice %87 {offsets = [0, 0], sizes = [1, 256], strides = [1, 1]} : vector<3x256xf32> to vector<1x256xf32>
      %90 = vector.broadcast %88 : vector<8x1xf32> to vector<8x256xf32>
      %91 = vector.broadcast %89 : vector<1x256xf32> to vector<8x256xf32>
      %92 = arith.mulf %90, %91 : vector<8x256xf32>
      %93 = arith.addf %82, %92 : vector<8x256xf32>
      %94 = vector.extract_strided_slice %0 {offsets = [0, 7], sizes = [8, 1], strides = [1, 1]} : vector<8x27xf32> to vector<8x1xf32>
      %95 = vector.extract_strided_slice %87 {offsets = [1, 0], sizes = [1, 256], strides = [1, 1]} : vector<3x256xf32> to vector<1x256xf32>
      %96 = vector.broadcast %94 : vector<8x1xf32> to vector<8x256xf32>
      %97 = vector.broadcast %95 : vector<1x256xf32> to vector<8x256xf32>
      %98 = arith.mulf %96, %97 : vector<8x256xf32>
      %99 = arith.addf %93, %98 : vector<8x256xf32>
      %100 = vector.extract_strided_slice %0 {offsets = [0, 8], sizes = [8, 1], strides = [1, 1]} : vector<8x27xf32> to vector<8x1xf32>
      %101 = vector.extract_strided_slice %87 {offsets = [2, 0], sizes = [1, 256], strides = [1, 1]} : vector<3x256xf32> to vector<1x256xf32>
      %102 = vector.broadcast %100 : vector<8x1xf32> to vector<8x256xf32>
      %103 = vector.broadcast %101 : vector<1x256xf32> to vector<8x256xf32>
      %104 = arith.mulf %102, %103 : vector<8x256xf32>
      %105 = arith.addf %99, %104 : vector<8x256xf32>
      %c1_i32_17 = arith.constant 1 : i32
      %106 = tpu.dynamic_rotate %36 by %c1_i32_17 dim 1 : vector<3x256xf32>, i32 -> vector<3x256xf32>
      %cst_18 = arith.constant 0.000000e+00 : f32
      %107 = vector.shape_cast %22 : vector<1x256xi1> to vector<1x256xi1>
      %108 = vector.broadcast %107 : vector<1x256xi1> to vector<3x256xi1>
      %109 = vector.broadcast %cst_18 : f32 to vector<3x256xf32>
      %110 = arith.select %108, %106, %109 : vector<3x256xi1>, vector<3x256xf32>
      %111 = vector.extract_strided_slice %0 {offsets = [0, 9], sizes = [8, 1], strides = [1, 1]} : vector<8x27xf32> to vector<8x1xf32>
      %112 = vector.extract_strided_slice %110 {offsets = [0, 0], sizes = [1, 256], strides = [1, 1]} : vector<3x256xf32> to vector<1x256xf32>
      %113 = vector.broadcast %111 : vector<8x1xf32> to vector<8x256xf32>
      %114 = vector.broadcast %112 : vector<1x256xf32> to vector<8x256xf32>
      %115 = arith.mulf %113, %114 : vector<8x256xf32>
      %116 = arith.addf %105, %115 : vector<8x256xf32>
      %117 = vector.extract_strided_slice %0 {offsets = [0, 10], sizes = [8, 1], strides = [1, 1]} : vector<8x27xf32> to vector<8x1xf32>
      %118 = vector.extract_strided_slice %110 {offsets = [1, 0], sizes = [1, 256], strides = [1, 1]} : vector<3x256xf32> to vector<1x256xf32>
      %119 = vector.broadcast %117 : vector<8x1xf32> to vector<8x256xf32>
      %120 = vector.broadcast %118 : vector<1x256xf32> to vector<8x256xf32>
      %121 = arith.mulf %119, %120 : vector<8x256xf32>
      %122 = arith.addf %116, %121 : vector<8x256xf32>
      %123 = vector.extract_strided_slice %0 {offsets = [0, 11], sizes = [8, 1], strides = [1, 1]} : vector<8x27xf32> to vector<8x1xf32>
      %124 = vector.extract_strided_slice %110 {offsets = [2, 0], sizes = [1, 256], strides = [1, 1]} : vector<3x256xf32> to vector<1x256xf32>
      %125 = vector.broadcast %123 : vector<8x1xf32> to vector<8x256xf32>
      %126 = vector.broadcast %124 : vector<1x256xf32> to vector<8x256xf32>
      %127 = arith.mulf %125, %126 : vector<8x256xf32>
      %128 = arith.addf %122, %127 : vector<8x256xf32>
      %129 = vector.extract_strided_slice %0 {offsets = [0, 12], sizes = [8, 1], strides = [1, 1]} : vector<8x27xf32> to vector<8x1xf32>
      %130 = vector.extract_strided_slice %36 {offsets = [0, 0], sizes = [1, 256], strides = [1, 1]} : vector<3x256xf32> to vector<1x256xf32>
      %131 = vector.broadcast %129 : vector<8x1xf32> to vector<8x256xf32>
      %132 = vector.broadcast %130 : vector<1x256xf32> to vector<8x256xf32>
      %133 = arith.mulf %131, %132 : vector<8x256xf32>
      %134 = arith.addf %128, %133 : vector<8x256xf32>
      %135 = vector.extract_strided_slice %0 {offsets = [0, 13], sizes = [8, 1], strides = [1, 1]} : vector<8x27xf32> to vector<8x1xf32>
      %136 = vector.extract_strided_slice %36 {offsets = [1, 0], sizes = [1, 256], strides = [1, 1]} : vector<3x256xf32> to vector<1x256xf32>
      %137 = vector.broadcast %135 : vector<8x1xf32> to vector<8x256xf32>
      %138 = vector.broadcast %136 : vector<1x256xf32> to vector<8x256xf32>
      %139 = arith.mulf %137, %138 : vector<8x256xf32>
      %140 = arith.addf %134, %139 : vector<8x256xf32>
      %141 = vector.extract_strided_slice %0 {offsets = [0, 14], sizes = [8, 1], strides = [1, 1]} : vector<8x27xf32> to vector<8x1xf32>
      %142 = vector.extract_strided_slice %36 {offsets = [2, 0], sizes = [1, 256], strides = [1, 1]} : vector<3x256xf32> to vector<1x256xf32>
      %143 = vector.broadcast %141 : vector<8x1xf32> to vector<8x256xf32>
      %144 = vector.broadcast %142 : vector<1x256xf32> to vector<8x256xf32>
      %145 = arith.mulf %143, %144 : vector<8x256xf32>
      %146 = arith.addf %140, %145 : vector<8x256xf32>
      %c255_i32 = arith.constant 255 : i32
      %147 = tpu.dynamic_rotate %36 by %c255_i32 dim 1 : vector<3x256xf32>, i32 -> vector<3x256xf32>
      %cst_19 = arith.constant 0.000000e+00 : f32
      %148 = vector.shape_cast %24 : vector<1x256xi1> to vector<1x256xi1>
      %149 = vector.broadcast %148 : vector<1x256xi1> to vector<3x256xi1>
      %150 = vector.broadcast %cst_19 : f32 to vector<3x256xf32>
      %151 = arith.select %149, %147, %150 : vector<3x256xi1>, vector<3x256xf32>
      %152 = vector.extract_strided_slice %0 {offsets = [0, 15], sizes = [8, 1], strides = [1, 1]} : vector<8x27xf32> to vector<8x1xf32>
      %153 = vector.extract_strided_slice %151 {offsets = [0, 0], sizes = [1, 256], strides = [1, 1]} : vector<3x256xf32> to vector<1x256xf32>
      %154 = vector.broadcast %152 : vector<8x1xf32> to vector<8x256xf32>
      %155 = vector.broadcast %153 : vector<1x256xf32> to vector<8x256xf32>
      %156 = arith.mulf %154, %155 : vector<8x256xf32>
      %157 = arith.addf %146, %156 : vector<8x256xf32>
      %158 = vector.extract_strided_slice %0 {offsets = [0, 16], sizes = [8, 1], strides = [1, 1]} : vector<8x27xf32> to vector<8x1xf32>
      %159 = vector.extract_strided_slice %151 {offsets = [1, 0], sizes = [1, 256], strides = [1, 1]} : vector<3x256xf32> to vector<1x256xf32>
      %160 = vector.broadcast %158 : vector<8x1xf32> to vector<8x256xf32>
      %161 = vector.broadcast %159 : vector<1x256xf32> to vector<8x256xf32>
      %162 = arith.mulf %160, %161 : vector<8x256xf32>
      %163 = arith.addf %157, %162 : vector<8x256xf32>
      %164 = vector.extract_strided_slice %0 {offsets = [0, 17], sizes = [8, 1], strides = [1, 1]} : vector<8x27xf32> to vector<8x1xf32>
      %165 = vector.extract_strided_slice %151 {offsets = [2, 0], sizes = [1, 256], strides = [1, 1]} : vector<3x256xf32> to vector<1x256xf32>
      %166 = vector.broadcast %164 : vector<8x1xf32> to vector<8x256xf32>
      %167 = vector.broadcast %165 : vector<1x256xf32> to vector<8x256xf32>
      %168 = arith.mulf %166, %167 : vector<8x256xf32>
      %169 = arith.addf %163, %168 : vector<8x256xf32>
      %c241_i32 = arith.constant 241 : i32
      %170 = tpu.dynamic_rotate %36 by %c241_i32 dim 1 : vector<3x256xf32>, i32 -> vector<3x256xf32>
      %cst_20 = arith.constant 0.000000e+00 : f32
      %171 = vector.shape_cast %31 : vector<1x256xi1> to vector<1x256xi1>
      %172 = vector.broadcast %171 : vector<1x256xi1> to vector<3x256xi1>
      %173 = vector.broadcast %cst_20 : f32 to vector<3x256xf32>
      %174 = arith.select %172, %170, %173 : vector<3x256xi1>, vector<3x256xf32>
      %175 = vector.extract_strided_slice %0 {offsets = [0, 18], sizes = [8, 1], strides = [1, 1]} : vector<8x27xf32> to vector<8x1xf32>
      %176 = vector.extract_strided_slice %174 {offsets = [0, 0], sizes = [1, 256], strides = [1, 1]} : vector<3x256xf32> to vector<1x256xf32>
      %177 = vector.broadcast %175 : vector<8x1xf32> to vector<8x256xf32>
      %178 = vector.broadcast %176 : vector<1x256xf32> to vector<8x256xf32>
      %179 = arith.mulf %177, %178 : vector<8x256xf32>
      %180 = arith.addf %169, %179 : vector<8x256xf32>
      %181 = vector.extract_strided_slice %0 {offsets = [0, 19], sizes = [8, 1], strides = [1, 1]} : vector<8x27xf32> to vector<8x1xf32>
      %182 = vector.extract_strided_slice %174 {offsets = [1, 0], sizes = [1, 256], strides = [1, 1]} : vector<3x256xf32> to vector<1x256xf32>
      %183 = vector.broadcast %181 : vector<8x1xf32> to vector<8x256xf32>
      %184 = vector.broadcast %182 : vector<1x256xf32> to vector<8x256xf32>
      %185 = arith.mulf %183, %184 : vector<8x256xf32>
      %186 = arith.addf %180, %185 : vector<8x256xf32>
      %187 = vector.extract_strided_slice %0 {offsets = [0, 20], sizes = [8, 1], strides = [1, 1]} : vector<8x27xf32> to vector<8x1xf32>
      %188 = vector.extract_strided_slice %174 {offsets = [2, 0], sizes = [1, 256], strides = [1, 1]} : vector<3x256xf32> to vector<1x256xf32>
      %189 = vector.broadcast %187 : vector<8x1xf32> to vector<8x256xf32>
      %190 = vector.broadcast %188 : vector<1x256xf32> to vector<8x256xf32>
      %191 = arith.mulf %189, %190 : vector<8x256xf32>
      %192 = arith.addf %186, %191 : vector<8x256xf32>
      %c240_i32_21 = arith.constant 240 : i32
      %193 = tpu.dynamic_rotate %36 by %c240_i32_21 dim 1 : vector<3x256xf32>, i32 -> vector<3x256xf32>
      %cst_22 = arith.constant 0.000000e+00 : f32
      %194 = vector.shape_cast %28 : vector<1x256xi1> to vector<1x256xi1>
      %195 = vector.broadcast %194 : vector<1x256xi1> to vector<3x256xi1>
      %196 = vector.broadcast %cst_22 : f32 to vector<3x256xf32>
      %197 = arith.select %195, %193, %196 : vector<3x256xi1>, vector<3x256xf32>
      %198 = vector.extract_strided_slice %0 {offsets = [0, 21], sizes = [8, 1], strides = [1, 1]} : vector<8x27xf32> to vector<8x1xf32>
      %199 = vector.extract_strided_slice %197 {offsets = [0, 0], sizes = [1, 256], strides = [1, 1]} : vector<3x256xf32> to vector<1x256xf32>
      %200 = vector.broadcast %198 : vector<8x1xf32> to vector<8x256xf32>
      %201 = vector.broadcast %199 : vector<1x256xf32> to vector<8x256xf32>
      %202 = arith.mulf %200, %201 : vector<8x256xf32>
      %203 = arith.addf %192, %202 : vector<8x256xf32>
      %204 = vector.extract_strided_slice %0 {offsets = [0, 22], sizes = [8, 1], strides = [1, 1]} : vector<8x27xf32> to vector<8x1xf32>
      %205 = vector.extract_strided_slice %197 {offsets = [1, 0], sizes = [1, 256], strides = [1, 1]} : vector<3x256xf32> to vector<1x256xf32>
      %206 = vector.broadcast %204 : vector<8x1xf32> to vector<8x256xf32>
      %207 = vector.broadcast %205 : vector<1x256xf32> to vector<8x256xf32>
      %208 = arith.mulf %206, %207 : vector<8x256xf32>
      %209 = arith.addf %203, %208 : vector<8x256xf32>
      %210 = vector.extract_strided_slice %0 {offsets = [0, 23], sizes = [8, 1], strides = [1, 1]} : vector<8x27xf32> to vector<8x1xf32>
      %211 = vector.extract_strided_slice %197 {offsets = [2, 0], sizes = [1, 256], strides = [1, 1]} : vector<3x256xf32> to vector<1x256xf32>
      %212 = vector.broadcast %210 : vector<8x1xf32> to vector<8x256xf32>
      %213 = vector.broadcast %211 : vector<1x256xf32> to vector<8x256xf32>
      %214 = arith.mulf %212, %213 : vector<8x256xf32>
      %215 = arith.addf %209, %214 : vector<8x256xf32>
      %c239_i32 = arith.constant 239 : i32
      %216 = tpu.dynamic_rotate %36 by %c239_i32 dim 1 : vector<3x256xf32>, i32 -> vector<3x256xf32>
      %cst_23 = arith.constant 0.000000e+00 : f32
      %217 = vector.shape_cast %32 : vector<1x256xi1> to vector<1x256xi1>
      %218 = vector.broadcast %217 : vector<1x256xi1> to vector<3x256xi1>
      %219 = vector.broadcast %cst_23 : f32 to vector<3x256xf32>
      %220 = arith.select %218, %216, %219 : vector<3x256xi1>, vector<3x256xf32>
      %221 = vector.extract_strided_slice %0 {offsets = [0, 24], sizes = [8, 1], strides = [1, 1]} : vector<8x27xf32> to vector<8x1xf32>
      %222 = vector.extract_strided_slice %220 {offsets = [0, 0], sizes = [1, 256], strides = [1, 1]} : vector<3x256xf32> to vector<1x256xf32>
      %223 = vector.broadcast %221 : vector<8x1xf32> to vector<8x256xf32>
      %224 = vector.broadcast %222 : vector<1x256xf32> to vector<8x256xf32>
      %225 = arith.mulf %223, %224 : vector<8x256xf32>
      %226 = arith.addf %215, %225 : vector<8x256xf32>
      %227 = vector.extract_strided_slice %0 {offsets = [0, 25], sizes = [8, 1], strides = [1, 1]} : vector<8x27xf32> to vector<8x1xf32>
      %228 = vector.extract_strided_slice %220 {offsets = [1, 0], sizes = [1, 256], strides = [1, 1]} : vector<3x256xf32> to vector<1x256xf32>
      %229 = vector.broadcast %227 : vector<8x1xf32> to vector<8x256xf32>
      %230 = vector.broadcast %228 : vector<1x256xf32> to vector<8x256xf32>
      %231 = arith.mulf %229, %230 : vector<8x256xf32>
      %232 = arith.addf %226, %231 : vector<8x256xf32>
      %233 = vector.extract_strided_slice %0 {offsets = [0, 26], sizes = [8, 1], strides = [1, 1]} : vector<8x27xf32> to vector<8x1xf32>
      %234 = vector.extract_strided_slice %220 {offsets = [2, 0], sizes = [1, 256], strides = [1, 1]} : vector<3x256xf32> to vector<1x256xf32>
      %235 = vector.broadcast %233 : vector<8x1xf32> to vector<8x256xf32>
      %236 = vector.broadcast %234 : vector<1x256xf32> to vector<8x256xf32>
      %237 = arith.mulf %235, %236 : vector<8x256xf32>
      %238 = arith.addf %232, %237 : vector<8x256xf32>
      %cst_24 = arith.constant 0.000000e+00 : f32
      %239 = vector.broadcast %cst_24 : f32 to vector<8x256xf32>
      %240 = arith.maximumf %238, %239 : vector<8x256xf32>
      %241 = arith.index_cast %arg5 : i32 to index
      %c0_25 = arith.constant 0 : index
      %c0_26 = arith.constant 0 : index
      %242 = vector.load %arg4[%241, %c0_25, %c0_26] : memref<2x8x256xf32, #tpu.memory_space<vmem>>, vector<1x8x256xf32>
      %243 = vector.shape_cast %242 : vector<1x8x256xf32> to vector<8x256xf32>
      %244 = vector.shape_cast %240 : vector<8x256xf32> to vector<1x8x256xf32>
      tpu.vector_store %arg4[%241, %c0_25, %c0_26], %244 {strides = array<i32>} : memref<2x8x256xf32, #tpu.memory_space<vmem>>, vector<1x8x256xf32>,
    }
    %c2_i32_10 = arith.constant 2 : i32
    return
  }
  func.func @transform_0(%arg0: i32) -> (i32, i32, i32) {
    %c0_i32 = arith.constant 0 : i32
    %c0_i32_0 = arith.constant 0 : i32
    %c0_i32_1 = arith.constant 0 : i32
    return %arg0, %c0_i32, %c0_i32_0 : i32, i32, i32
  }
  func.func @transform_1(%arg0: i32) -> (i32, i32) {
    %c0_i32 = arith.constant 0 : i32
    %c0_i32_0 = arith.constant 0 : i32
    %c0_i32_1 = arith.constant 0 : i32
    return %c0_i32, %c0_i32_0 : i32, i32
  }
  func.func @transform_2(%arg0: i32) -> (i32, i32) {
    %c0_i32 = arith.constant 0 : i32
    %c0_i32_0 = arith.constant 0 : i32
    %c0_i32_1 = arith.constant 0 : i32
    return %c0_i32, %c0_i32_0 : i32, i32
  }
  func.func @transform_3(%arg0: i32) -> (i32, i32, i32) {
    %c0_i32 = arith.constant 0 : i32
    %c0_i32_0 = arith.constant 0 : i32
    %c0_i32_1 = arith.constant 0 : i32
    return %arg0, %c0_i32, %c0_i32_0 : i32, i32, i32
  }
}

</mosaic_0001>

<llo_original>
// kernel: model_forward.1
$region0: #{model_forward.1}
  #allocation0 [shape = 'u32[]', space=smem, size = 0x4, offset = 0x4, fixed_abs, tag = 'smem constant byte address 0x4 - core index']
  #allocation1 [shape = 'u32[144,128]{1,0:T(1,128)}', space=vmem, size = 0x12000, scoped, tag = 'internal scratch']
  %s0 = inlined_call_operand.vmem [shape: f32[4,3,256], index: 0, kind: input, shape index: {}]
  %s1 = inlined_call_operand.vmem [shape: f32[8,27], index: 1, kind: input, shape index: {}]
  %s2 = inlined_call_operand.vmem [shape: f32[8,1], index: 2, kind: input, shape index: {}]
  %s3 = inlined_call_operand.vmem [shape: f32[4,8,256], index: 3, kind: output, shape index: {}]
  %s4 = sld [smem:[#allocation0]]
  $region52: #{model_forward.1} parent=0
    _
  %s6 = ssub.s32 1, %s4
  %s7 = scalar_select 0, %s6, %s4
  loop: start=0, step=1, limit=4
  $region2: #{model_forward.1} parent=0 // loop_pre_header
    _
  $region3: #{model_forward.1} parent=0 // loop_header
    %s9 = sphi 0, %s13
    %p10 = scmp.ge.s32.totalorder %s9, 4
    %s19 = sphi 0, %s21
    %s22 = sphi 0, %s19
    %s23 = sphi 0, %s22
    %s39 = sphi 0, %s23
    %s43 = sphi 0, %s43
    %s45 = sphi 0, %s43
    %s46 = sphi 0, %s45
    %s60 = sphi 0, %s46
    %s64 = sphi 0, %s64
    %s66 = sphi 0, %s64
    %s67 = sphi 0, %s66
    %s81 = sphi 0, %s67
    %s87 = sphi 0, %s89
    %s90 = sphi 0, %s87
    %s91 = sphi 0, %s90
    %s107 = sphi 0, %s91
  $region4: #{model_forward.1} parent=0 // loop_header_branch
    %12 = sbr.rel (%p10) target = $region8
  $region5: #{model_forward.1} parent=0 // loop_body
    %s14 = ssub.s32 %s9, 1
    %s15 = ssub.s32 %s9, 2
    %s16 = sadd.s32 %s9, 1
    %s17 = ssub.s32 %s9, %s16
    %p18 = scmp.eq.s32.totalorder %s17, 0
    %s20 = sadd.s32 %s19, 1
    %s21 = scalar_select %p18, %s19, %s20
    %p24 = pneg %p18
    %p25 = scmp.eq.s32.totalorder %s9, 1
    %p26 = por %p24, %p25
    %p27 = scmp.ne.s32.totalorder %s19, %s22
    %p28 = scmp.eq.s32.totalorder %s9, 0
    %p29 = por %p27, %p28
    %p30 = scmp.ne.s32.totalorder %s19, %s22
    %p31 = scmp.eq.s32.totalorder %s14, 1
    %p32 = por %p30, %p31
    %p33 = scmp.ne.s32.totalorder %s22, %s23
    %p34 = scmp.eq.s32.totalorder %s14, 0
    %p35 = por %p33, %p34
    %p36 = scmp.ne.s32.totalorder %s22, %s23
    %p37 = scmp.eq.s32.totalorder %s15, 1
    %p38 = por %p36, %p37
    %p40 = scmp.ne.s32.totalorder %s23, %s39
    %p41 = scmp.eq.s32.totalorder %s15, 0
    %p42 = por %p40, %p41
    %s44 = sadd.s32 %s43, 1
    %p47 = scmp.eq.s32.totalorder %s9, 1
    %p48 = scmp.ne.s32.totalorder %s43, %s45
    %p49 = scmp.eq.s32.totalorder %s9, 0
    %p50 = por %p48, %p49
    %p51 = scmp.ne.s32.totalorder %s43, %s45
    %p52 = scmp.eq.s32.totalorder %s14, 1
    %p53 = por %p51, %p52
    %p54 = scmp.ne.s32.totalorder %s45, %s46
    %p55 = scmp.eq.s32.totalorder %s14, 0
    %p56 = por %p54, %p55
    %p57 = scmp.ne.s32.totalorder %s45, %s46
    %p58 = scmp.eq.s32.totalorder %s15, 1
    %p59 = por %p57, %p58
    %p61 = scmp.ne.s32.totalorder %s46, %s60
    %p62 = scmp.eq.s32.totalorder %s15, 0
    %p63 = por %p61, %p62
    %s65 = sadd.s32 %s64, 1
    %p68 = scmp.eq.s32.totalorder %s9, 1
    %p69 = scmp.ne.s32.totalorder %s64, %s66
    %p70 = scmp.eq.s32.totalorder %s9, 0
    %p71 = por %p69, %p70
    %p72 = scmp.ne.s32.totalorder %s64, %s66
    %p73 = scmp.eq.s32.totalorder %s14, 1
    %p74 = por %p72, %p73
    %p75 = scmp.ne.s32.totalorder %s66, %s67
    %p76 = scmp.eq.s32.totalorder %s14, 0
    %p77 = por %p75, %p76
    %p78 = scmp.ne.s32.totalorder %s66, %s67
    %p79 = scmp.eq.s32.totalorder %s15, 1
    %p80 = por %p78, %p79
    %p82 = scmp.ne.s32.totalorder %s67, %s81
    %p83 = scmp.eq.s32.totalorder %s15, 0
    %p84 = por %p82, %p83
    %s85 = ssub.s32 %s9, %s16
    %p86 = scmp.eq.s32.totalorder %s85, 0
    %s88 = sadd.s32 %s87, 1
    %s89 = scalar_select %p86, %s87, %s88
    %p92 = pneg %p86
    %p93 = scmp.eq.s32.totalorder %s9, 1
    %p94 = por %p92, %p93
    %p95 = scmp.ne.s32.totalorder %s87, %s90
    %p96 = scmp.eq.s32.totalorder %s9, 0
    %p97 = por %p95, %p96
    %p98 = scmp.ne.s32.totalorder %s87, %s90
    %p99 = scmp.eq.s32.totalorder %s14, 1
    %p100 = por %p98, %p99
    %p101 = scmp.ne.s32.totalorder %s90, %s91
    %p102 = scmp.eq.s32.totalorder %s14, 0
    %p103 = por %p101, %p102
    %p104 = scmp.ne.s32.totalorder %s90, %s91
    %p105 = scmp.eq.s32.totalorder %s15, 1
    %p106 = por %p104, %p105
    %p108 = scmp.ne.s32.totalorder %s91, %s107
    %p109 = scmp.eq.s32.totalorder %s15, 0
    %p110 = por %p108, %p109
    %p111 = scmp.le.s32.totalorder 1, %s9
    %p112 = scmp.lt.s32.totalorder %s9, 3
    %p113 = pnand %p111, %p112
    %p114 = pneg %p113
    // Predicated region
    $region9: #{model_forward.1} parent=5 // pred_check
      _
    $region10: #{model_forward.1} parent=5 // pred_check_branch
      %116 = sbr.rel (%p113) target = $region12
    $region11: #{model_forward.1} parent=5 // pred_region
      %s117 = ssub.s32 %s9, 1
      // Predicated region
      $region13: #{model_forward.1} parent=11 // pred_check
        %p118 = pneg %p56
      $region14: #{model_forward.1} parent=11 // pred_check_branch
        %120 = sbr.rel (%p118) target = $region16
      $region15: #{model_forward.1} parent=11 // pred_region
        _
      $region16: #{model_forward.1} parent=11 // pred_fallthru
        _
      // Predicated region
      $region17: #{model_forward.1} parent=11 // pred_check
        %p121 = pneg %p77
      $region18: #{model_forward.1} parent=11 // pred_check_branch
        %123 = sbr.rel (%p121) target = $region20
      $region19: #{model_forward.1} parent=11 // pred_region
        _
      $region20: #{model_forward.1} parent=11 // pred_fallthru
        _
    $region12: #{model_forward.1} parent=5 // pred_fallthru
      _
    %p124 = scmp.lt.s32.totalorder %s9, 2
    // Predicated region
    $region21: #{model_forward.1} parent=5 // pred_check
      %p125 = pneg %p124
    $region22: #{model_forward.1} parent=5 // pred_check_branch
      %127 = sbr.rel (%p125) target = $region24
    $region23: #{model_forward.1} parent=5 // pred_region
      // Predicated region
      $region25: #{model_forward.1} parent=23 // pred_check
        %p128 = pneg %p29
      $region26: #{model_forward.1} parent=23 // pred_check_branch
        %130 = sbr.rel (%p128) target = $region28
      $region27: #{model_forward.1} parent=23 // pred_region
        %s131 = smul.u32 2, %s9
        %p132 = scmp.lt.s32.totalorder %s131, 3
        %s133 = scalar_select %p132, %s131, 3
        %s134 = smul.addr %s133, 2
        %s135 = smul.addr %s134, 4
        %s136 = scalar_lea.vmem %s0, %s135
        %s137 = smul.u32 2, %s9
      $region28: #{model_forward.1} parent=23 // pred_fallthru
        _
    $region24: #{model_forward.1} parent=5 // pred_fallthru
      _
    %p138 = scmp.le.s32.totalorder 1, %s9
    %p139 = scmp.lt.s32.totalorder %s9, 3
    %p140 = pnand %p138, %p139
    %p141 = pneg %p140
    // Predicated region
    $region29: #{model_forward.1} parent=5 // pred_check
      _
    $region30: #{model_forward.1} parent=5 // pred_check_branch
      %143 = sbr.rel (%p140) target = $region32
    $region31: #{model_forward.1} parent=5 // pred_region
      %s144 = ssub.s32 %s9, 1
      %s145 = smul.u32 2, %s14
      %p146 = scmp.lt.s32.totalorder %s145, 3
      %s147 = scalar_select %p146, %s145, 3
      %s148 = smul.addr %s147, 2
      %s149 = smul.addr %s148, 4
      %s150 = scalar_lea.vmem %s0, %s149
      %p151 = pneg %p35
      %p152 = pneg %p32
      %p153 = pneg %p56
      %p154 = pneg %p53
      %p155 = pneg %p77
      %p156 = pneg %p74
      %p157 = pneg %p103
      %p158 = pneg %p100
      %s159 = smul.u32 2, %s14
      %p160 = scmp.lt.s32.totalorder %s159, 3
      %s161 = scalar_select %p160, %s159, 3
      %s162 = smul.addr %s161, 2
      %s163 = smul.addr %s162, 8
      %s164 = scalar_lea.vmem %s3, %s163
      %s165 = smul.u32 2, %s14
      %p166 = scmp.lt.s32.totalorder %s165, 3
      %s167 = scalar_select %p166, %s165, 3
      %s168 = smul.addr %s167, 2
      %s169 = smul.addr %s168, 4
      %s170 = scalar_lea.vmem %s0, %s169
      %s171 = smul.u32 2, %s14
      %s172 = smul.u32 2, %s14
      %p173 = scmp.lt.s32.totalorder %s172, 3
      %s174 = scalar_select %p173, %s172, 3
      %s175 = smul.addr %s174, 2
      %s176 = smul.addr %s175, 8
      %s177 = scalar_lea.vmem %s3, %s176
      %s178 = smul.u32 2, %s14
      %v179 = vld [vmem:[%s1] sm:$0xff]
      %v180 = vld [vmem:[%s2] sm:$0xff]
      %182 = vset.pattern.permute.xlu0 0
      %183 = vperm.xlu0 %182, %v180
      %v184 = vpop.permute.xlu0 %183
      %v186 = vlaneseq
      %v187 = vand.u32 %v186, 127
      %v188 = vadd.s32 %v187, 128
      %vm189 = vcmp.lt.s32.totalorder %v187, 0
      %v190 = vsub.s32 0, %v187
      %v191 = vsel %vm189, %v190, %v187
      %v192 = vshrl.u32 %v191, 4
      %v193 = vand.u32 %v191, 15
      %v194 = vsub.s32 0, %v193
      %v195 = vsel %vm189, %v194, %v193
      %vm196 = vcmp.lt.s32.totalorder %v188, 0
      %v197 = vsub.s32 0, %v188
      %v198 = vsel %vm196, %v197, %v188
      %v199 = vshrl.u32 %v198, 4
      %v200 = vand.u32 %v198, 15
      %v201 = vsub.s32 0, %v200
      %v202 = vsel %vm196, %v201, %v200
      %vm203 = vcmp.ne.s32.totalorder %v195, 0
      %vm204 = vcmp.ne.s32.totalorder %v202, 0
      %vm205 = vcmp.lt.s32.totalorder %v195, 0
      %vm206 = vcmp.lt.s32.totalorder %v202, 0
      %vm207 = vmand %vm205, %vm203
      %vm208 = vmand %vm206, %vm204
      %v209 = vadd.s32 %v195, 16
      %v210 = vadd.s32 %v202, 16
      %v211 = vsel %vm207, %v209, %v195
      %v212 = vsel %vm208, %v210, %v202
      %vm213 = vcmp.ne.s32.totalorder %v211, 0
      %vm214 = vcmp.ne.s32.totalorder %v212, 0
      %vm215 = vcmp.ne.s32.totalorder %v211, 15
      %vm216 = vcmp.ne.s32.totalorder %v212, 15
      %vm217 = vcmp.ge.s32.totalorder %v187, 16
      %vm218 = vcmp.ge.s32.totalorder %v188, 16
      %vm219 = vcmp.lt.s32.totalorder %v187, 240
      %vm220 = vcmp.lt.s32.totalorder %v188, 240
      %vm221 = vmand %vm217, %vm213
      %vm222 = vmand %vm218, %vm214
      %vm223 = vmand %vm217, %vm215
      %vm224 = vmand %vm218, %vm216
      %vm225 = vmand %vm219, %vm213
      %vm226 = vmand %vm220, %vm214
      %vm227 = vmand %vm219, %vm215
      %vm228 = vmand %vm220, %vm216
      loop: start=0, step=1, limit=2
      $region33: #{model_forward.1} parent=31 // loop_pre_header
        _
      $region34: #{model_forward.1} parent=31 // loop_header
        %s230 = sphi 0, %s234
        %p231 = scmp.ge.s32.totalorder %s230, 2
      $region35: #{model_forward.1} parent=31 // loop_header_branch
        %233 = sbr.rel (%p231) target = $region39
      $region36: #{model_forward.1} parent=31 // loop_body
        %s235 = smul.u32 %s230, 2
        %s236 = smul.addr %s235, 4
        %s237 = scalar_lea.vmem %s170, %s236
        %v238 = vld [vmem:[%s237] sm:$0x77]
        %v240 = vcombine.high %v238, %v238
        %242 = vrot.lane.b32.xlu0 %v238, 17
        %v243 = vpop.permute.xlu0 %242
        %244 = vrot.lane.b32.xlu0 %v240, 17
        %v245 = vpop.permute.xlu0 %244
        %vm246 = vcmp.lt.s32.totalorder %v187, 17
        %v247 = vsel %vm246, %v243, %v245
        %v248 = vsel %vm246, %v245, %v243
        %v249 = vsel %vm221, 1, 0
        %v250 = vsel %vm222, 1, 0
        %vm251 = vcmp.eq.s32.totalorder %v249, 1
        %vm252 = vcmp.eq.s32.totalorder %v250, 1
        %v253 = vsel %vm251, %v248, 0.0
        %v254 = vsel %vm252, %v247, 0.0
        %256 = vset.pattern.permute.xlu0 0
        %257 = vperm.xlu0 %256, %v179
        %v258 = vpop.permute.xlu0 %257
        %v260 = vlaneseq
        %v261 = vshrl.u32 %v260, 7
        %v262 = vsub.s32 0, %v261
        %v263 = vrot.slane %v253, %v262
        %v264 = vlaneseq
        %v265 = vshrl.u32 %v264, 7
        %v266 = vsub.s32 0, %v265
        %v267 = vrot.slane %v254, %v266
        %v268 = vmul.f32 %v258, %v263
        %v269 = vmul.f32 %v258, %v267
        %v270 = vadd.f32 %v184, %v268
        %v271 = vadd.f32 %v184, %v269
        %272 = vset.pattern.permute.xlu0 1
        %273 = vperm.xlu0 %272, %v179
        %v274 = vpop.permute.xlu0 %273
        %v276 = vlaneseq
        %v277 = vshrl.u32 %v276, 7
        %v278 = vsub.s32 1, %v277
        %v279 = vrot.slane %v253, %v278
        %v280 = vlaneseq
        %v281 = vshrl.u32 %v280, 7
        %v282 = vsub.s32 1, %v281
        %v283 = vrot.slane %v254, %v282
        %v284 = vmul.f32 %v274, %v279
        %v285 = vmul.f32 %v274, %v283
        %v286 = vadd.f32 %v270, %v284
        %v287 = vadd.f32 %v271, %v285
        %288 = vset.pattern.permute.xlu0 2
        %289 = vperm.xlu0 %288, %v179
        %v290 = vpop.permute.xlu0 %289
        %v292 = vlaneseq
        %v293 = vshrl.u32 %v292, 7
        %v294 = vsub.s32 2, %v293
        %v295 = vrot.slane %v253, %v294
        %v296 = vlaneseq
        %v297 = vshrl.u32 %v296, 7
        %v298 = vsub.s32 2, %v297
        %v299 = vrot.slane %v254, %v298
        %v300 = vmul.f32 %v290, %v295
        %v301 = vmul.f32 %v290, %v299
        %v302 = vadd.f32 %v286, %v300
        %v303 = vadd.f32 %v287, %v301
        %304 = vrot.lane.b32.xlu0 %v238, 16
        %v305 = vpop.permute.xlu0 %304
        %306 = vrot.lane.b32.xlu0 %v240, 16
        %v307 = vpop.permute.xlu0 %306
        %vm308 = vcmp.lt.s32.totalorder %v187, 16
        %v309 = vsel %vm308, %v305, %v307
        %v310 = vsel %vm308, %v307, %v305
        %v311 = vsel %vm217, 1, 0
        %v312 = vsel %vm218, 1, 0
        %vm313 = vcmp.eq.s32.totalorder %v311, 1
        %vm314 = vcmp.eq.s32.totalorder %v312, 1
        %v315 = vsel %vm313, %v310, 0.0
        %v316 = vsel %vm314, %v309, 0.0
        %317 = vset.pattern.permute.xlu0 3
        %318 = vperm.xlu0 %317, %v179
        %v319 = vpop.permute.xlu0 %318
        %v321 = vlaneseq
        %v322 = vshrl.u32 %v321, 7
        %v323 = vsub.s32 0, %v322
        %v324 = vrot.slane %v315, %v323
        %v325 = vlaneseq
        %v326 = vshrl.u32 %v325, 7
        %v327 = vsub.s32 0, %v326
        %v328 = vrot.slane %v316, %v327
        %v329 = vmul.f32 %v319, %v324
        %v330 = vmul.f32 %v319, %v328
        %v331 = vadd.f32 %v302, %v329
        %v332 = vadd.f32 %v303, %v330
        %333 = vset.pattern.permute.xlu0 4
        %334 = vperm.xlu0 %333, %v179
        %v335 = vpop.permute.xlu0 %334
        %v337 = vlaneseq
        %v338 = vshrl.u32 %v337, 7
        %v339 = vsub.s32 1, %v338
        %v340 = vrot.slane %v315, %v339
        %v341 = vlaneseq
        %v342 = vshrl.u32 %v341, 7
        %v343 = vsub.s32 1, %v342
        %v344 = vrot.slane %v316, %v343
        %v345 = vmul.f32 %v335, %v340
        %v346 = vmul.f32 %v335, %v344
        %v347 = vadd.f32 %v331, %v345
        %v348 = vadd.f32 %v332, %v346
        %349 = vset.pattern.permute.xlu0 5
        %350 = vperm.xlu0 %349, %v179
        %v351 = vpop.permute.xlu0 %350
        %v353 = vlaneseq
        %v354 = vshrl.u32 %v353, 7
        %v355 = vsub.s32 2, %v354
        %v356 = vrot.slane %v315, %v355
        %v357 = vlaneseq
        %v358 = vshrl.u32 %v357, 7
        %v359 = vsub.s32 2, %v358
        %v360 = vrot.slane %v316, %v359
        %v361 = vmul.f32 %v351, %v356
        %v362 = vmul.f32 %v351, %v360
        %v363 = vadd.f32 %v347, %v361
        %v364 = vadd.f32 %v348, %v362
        %365 = vrot.lane.b32.xlu0 %v238, 15
        %v366 = vpop.permute.xlu0 %365
        %367 = vrot.lane.b32.xlu0 %v240, 15
        %v368 = vpop.permute.xlu0 %367
        %vm369 = vcmp.lt.s32.totalorder %v187, 15
        %v370 = vsel %vm369, %v366, %v368
        %v371 = vsel %vm369, %v368, %v366
        %v372 = vsel %vm223, 1, 0
        %v373 = vsel %vm224, 1, 0
        %vm374 = vcmp.eq.s32.totalorder %v372, 1
        %vm375 = vcmp.eq.s32.totalorder %v373, 1
        %v376 = vsel %vm374, %v371, 0.0
        %v377 = vsel %vm375, %v370, 0.0
        %378 = vset.pattern.permute.xlu0 6
        %379 = vperm.xlu0 %378, %v179
        %v380 = vpop.permute.xlu0 %379
        %v382 = vlaneseq
        %v383 = vshrl.u32 %v382, 7
        %v384 = vsub.s32 0, %v383
        %v385 = vrot.slane %v376, %v384
        %v386 = vlaneseq
        %v387 = vshrl.u32 %v386, 7
        %v388 = vsub.s32 0, %v387
        %v389 = vrot.slane %v377, %v388
        %v390 = vmul.f32 %v380, %v385
        %v391 = vmul.f32 %v380, %v389
        %v392 = vadd.f32 %v363, %v390
        %v393 = vadd.f32 %v364, %v391
        %394 = vset.pattern.permute.xlu0 7
        %395 = vperm.xlu0 %394, %v179
        %v396 = vpop.permute.xlu0 %395
        %v398 = vlaneseq
        %v399 = vshrl.u32 %v398, 7
        %v400 = vsub.s32 1, %v399
        %v401 = vrot.slane %v376, %v400
        %v402 = vlaneseq
        %v403 = vshrl.u32 %v402, 7
        %v404 = vsub.s32 1, %v403
        %v405 = vrot.slane %v377, %v404
        %v406 = vmul.f32 %v396, %v401
        %v407 = vmul.f32 %v396, %v405
        %v408 = vadd.f32 %v392, %v406
        %v409 = vadd.f32 %v393, %v407
        %410 = vset.pattern.permute.xlu0 8
        %411 = vperm.xlu0 %410, %v179
        %v412 = vpop.permute.xlu0 %411
        %v414 = vlaneseq
        %v415 = vshrl.u32 %v414, 7
        %v416 = vsub.s32 2, %v415
        %v417 = vrot.slane %v376, %v416
        %v418 = vlaneseq
        %v419 = vshrl.u32 %v418, 7
        %v420 = vsub.s32 2, %v419
        %v421 = vrot.slane %v377, %v420
        %v422 = vmul.f32 %v412, %v417
        %v423 = vmul.f32 %v412, %v421
        %v424 = vadd.f32 %v408, %v422
        %v425 = vadd.f32 %v409, %v423
        %426 = vrot.lane.b32.xlu0 %v238, 1
        %v427 = vpop.permute.xlu0 %426
        %428 = vrot.lane.b32.xlu0 %v240, 1
        %v429 = vpop.permute.xlu0 %428
        %vm430 = vcmp.lt.s32.totalorder %v187, 1
        %v431 = vsel %vm430, %v427, %v429
        %v432 = vsel %vm430, %v429, %v427
        %v433 = vsel %vm213, 1, 0
        %v434 = vsel %vm214, 1, 0
        %vm435 = vcmp.eq.s32.totalorder %v433, 1
        %vm436 = vcmp.eq.s32.totalorder %v434, 1
        %v437 = vsel %vm435, %v432, 0.0
        %v438 = vsel %vm436, %v431, 0.0
        %439 = vset.pattern.permute.xlu0 9
        %440 = vperm.xlu0 %439, %v179
        %v441 = vpop.permute.xlu0 %440
        %v443 = vlaneseq
        %v444 = vshrl.u32 %v443, 7
        %v445 = vsub.s32 0, %v444
        %v446 = vrot.slane %v437, %v445
        %v447 = vlaneseq
        %v448 = vshrl.u32 %v447, 7
        %v449 = vsub.s32 0, %v448
        %v450 = vrot.slane %v438, %v449
        %v451 = vmul.f32 %v441, %v446
        %v452 = vmul.f32 %v441, %v450
        %v453 = vadd.f32 %v424, %v451
        %v454 = vadd.f32 %v425, %v452
        %455 = vset.pattern.permute.xlu0 10
        %456 = vperm.xlu0 %455, %v179
        %v457 = vpop.permute.xlu0 %456
        %v459 = vlaneseq
        %v460 = vshrl.u32 %v459, 7
        %v461 = vsub.s32 1, %v460
        %v462 = vrot.slane %v437, %v461
        %v463 = vlaneseq
        %v464 = vshrl.u32 %v463, 7
        %v465 = vsub.s32 1, %v464
        %v466 = vrot.slane %v438, %v465
        %v467 = vmul.f32 %v457, %v462
        %v468 = vmul.f32 %v457, %v466
        %v469 = vadd.f32 %v453, %v467
        %v470 = vadd.f32 %v454, %v468
        %471 = vset.pattern.permute.xlu0 11
        %472 = vperm.xlu0 %471, %v179
        %v473 = vpop.permute.xlu0 %472
        %v475 = vlaneseq
        %v476 = vshrl.u32 %v475, 7
        %v477 = vsub.s32 2, %v476
        %v478 = vrot.slane %v437, %v477
        %v479 = vlaneseq
        %v480 = vshrl.u32 %v479, 7
        %v481 = vsub.s32 2, %v480
        %v482 = vrot.slane %v438, %v481
        %v483 = vmul.f32 %v473, %v478
        %v484 = vmul.f32 %v473, %v482
        %v485 = vadd.f32 %v469, %v483
        %v486 = vadd.f32 %v470, %v484
        %487 = vset.pattern.permute.xlu0 12
        %488 = vperm.xlu0 %487, %v179
        %v489 = vpop.permute.xlu0 %488
        %v491 = vlaneseq
        %v492 = vshrl.u32 %v491, 7
        %v493 = vsub.s32 0, %v492
        %v494 = vrot.slane %v238, %v493
        %v495 = vlaneseq
        %v496 = vshrl.u32 %v495, 7
        %v497 = vsub.s32 4, %v496
        %v498 = vrot.slane %v238, %v497
        %v501 = vlaneseq
        %v502 = vshrl.u32 %v501, 7
        %v503 = vsub.s32 0, %v502
        %v504 = vrot.slane %v494, %v503
        %v505 = vlaneseq
        %v506 = vshrl.u32 %v505, 7
        %v507 = vsub.s32 0, %v506
        %v508 = vrot.slane %v498, %v507
        %v509 = vmul.f32 %v489, %v504
        %v510 = vmul.f32 %v489, %v508
        %v511 = vadd.f32 %v485, %v509
        %v512 = vadd.f32 %v486, %v510
        %513 = vset.pattern.permute.xlu0 13
        %514 = vperm.xlu0 %513, %v179
        %v515 = vpop.permute.xlu0 %514
        %v517 = vlaneseq
        %v518 = vshrl.u32 %v517, 7
        %v519 = vsub.s32 1, %v518
        %v520 = vrot.slane %v238, %v519
        %v521 = vlaneseq
        %v522 = vshrl.u32 %v521, 7
        %v523 = vsub.s32 5, %v522
        %v524 = vrot.slane %v238, %v523
        %v527 = vlaneseq
        %v528 = vshrl.u32 %v527, 7
        %v529 = vsub.s32 1, %v528
        %v530 = vrot.slane %v520, %v529
        %v531 = vlaneseq
        %v532 = vshrl.u32 %v531, 7
        %v533 = vsub.s32 1, %v532
        %v534 = vrot.slane %v524, %v533
        %v535 = vmul.f32 %v515, %v530
        %v536 = vmul.f32 %v515, %v534
        %v537 = vadd.f32 %v511, %v535
        %v538 = vadd.f32 %v512, %v536
        %539 = vset.pattern.permute.xlu0 14
        %540 = vperm.xlu0 %539, %v179
        %v541 = vpop.permute.xlu0 %540
        %v543 = vlaneseq
        %v544 = vshrl.u32 %v543, 7
        %v545 = vsub.s32 2, %v544
        %v546 = vrot.slane %v238, %v545
        %v547 = vlaneseq
        %v548 = vshrl.u32 %v547, 7
        %v549 = vsub.s32 6, %v548
        %v550 = vrot.slane %v238, %v549
        %v553 = vlaneseq
        %v554 = vshrl.u32 %v553, 7
        %v555 = vsub.s32 2, %v554
        %v556 = vrot.slane %v546, %v555
        %v557 = vlaneseq
        %v558 = vshrl.u32 %v557, 7
        %v559 = vsub.s32 2, %v558
        %v560 = vrot.slane %v550, %v559
        %v561 = vmul.f32 %v541, %v556
        %v562 = vmul.f32 %v541, %v560
        %v563 = vadd.f32 %v537, %v561
        %v564 = vadd.f32 %v538, %v562
        %565 = vrot.lane.b32.xlu0 %v238, 127
        %v566 = vpop.permute.xlu0 %565
        %567 = vrot.lane.b32.xlu0 %v240, 127
        %v568 = vpop.permute.xlu0 %567
        %vm569 = vcmp.lt.s32.totalorder %v187, 127
        %v570 = vsel %vm569, %v566, %v568
        %v571 = vsel %vm569, %v568, %v566
        %v572 = vsel %vm215, 1, 0
        %v573 = vsel %vm216, 1, 0
        %vm574 = vcmp.eq.s32.totalorder %v572, 1
        %vm575 = vcmp.eq.s32.totalorder %v573, 1
        %v576 = vsel %vm574, %v570, 0.0
        %v577 = vsel %vm575, %v571, 0.0
        %578 = vset.pattern.permute.xlu0 15
        %579 = vperm.xlu0 %578, %v179
        %v580 = vpop.permute.xlu0 %579
        %v582 = vlaneseq
        %v583 = vshrl.u32 %v582, 7
        %v584 = vsub.s32 0, %v583
        %v585 = vrot.slane %v576, %v584
        %v586 = vlaneseq
        %v587 = vshrl.u32 %v586, 7
        %v588 = vsub.s32 0, %v587
        %v589 = vrot.slane %v577, %v588
        %v590 = vmul.f32 %v580, %v585
        %v591 = vmul.f32 %v580, %v589
        %v592 = vadd.f32 %v563, %v590
        %v593 = vadd.f32 %v564, %v591
        %594 = vset.pattern.permute.xlu0 16
        %595 = vperm.xlu0 %594, %v179
        %v596 = vpop.permute.xlu0 %595
        %v598 = vlaneseq
        %v599 = vshrl.u32 %v598, 7
        %v600 = vsub.s32 1, %v599
        %v601 = vrot.slane %v576, %v600
        %v602 = vlaneseq
        %v603 = vshrl.u32 %v602, 7
        %v604 = vsub.s32 1, %v603
        %v605 = vrot.slane %v577, %v604
        %v606 = vmul.f32 %v596, %v601
        %v607 = vmul.f32 %v596, %v605
        %v608 = vadd.f32 %v592, %v606
        %v609 = vadd.f32 %v593, %v607
        %610 = vset.pattern.permute.xlu0 17
        %611 = vperm.xlu0 %610, %v179
        %v612 = vpop.permute.xlu0 %611
        %v614 = vlaneseq
        %v615 = vshrl.u32 %v614, 7
        %v616 = vsub.s32 2, %v615
        %v617 = vrot.slane %v576, %v616
        %v618 = vlaneseq
        %v619 = vshrl.u32 %v618, 7
        %v620 = vsub.s32 2, %v619
        %v621 = vrot.slane %v577, %v620
        %v622 = vmul.f32 %v612, %v617
        %v623 = vmul.f32 %v612, %v621
        %v624 = vadd.f32 %v608, %v622
        %v625 = vadd.f32 %v609, %v623
        %626 = vrot.lane.b32.xlu0 %v238, 113
        %v627 = vpop.permute.xlu0 %626
        %628 = vrot.lane.b32.xlu0 %v240, 113
        %v629 = vpop.permute.xlu0 %628
        %vm630 = vcmp.lt.s32.totalorder %v187, 113
        %v631 = vsel %vm630, %v627, %v629
        %v632 = vsel %vm630, %v629, %v627
        %v633 = vsel %vm225, 1, 0
        %v634 = vsel %vm226, 1, 0
        %vm635 = vcmp.eq.s32.totalorder %v633, 1
        %vm636 = vcmp.eq.s32.totalorder %v634, 1
        %v637 = vsel %vm635, %v631, 0.0
        %v638 = vsel %vm636, %v632, 0.0
        %639 = vset.pattern.permute.xlu0 18
        %640 = vperm.xlu0 %639, %v179
        %v641 = vpop.permute.xlu0 %640
        %v643 = vlaneseq
        %v644 = vshrl.u32 %v643, 7
        %v645 = vsub.s32 0, %v644
        %v646 = vrot.slane %v637, %v645
        %v647 = vlaneseq
        %v648 = vshrl.u32 %v647, 7
        %v649 = vsub.s32 0, %v648
        %v650 = vrot.slane %v638, %v649
        %v651 = vmul.f32 %v641, %v646
        %v652 = vmul.f32 %v641, %v650
        %v653 = vadd.f32 %v624, %v651
        %v654 = vadd.f32 %v625, %v652
        %655 = vset.pattern.permute.xlu0 19
        %656 = vperm.xlu0 %655, %v179
        %v657 = vpop.permute.xlu0 %656
        %v659 = vlaneseq
        %v660 = vshrl.u32 %v659, 7
        %v661 = vsub.s32 1, %v660
        %v662 = vrot.slane %v637, %v661
        %v663 = vlaneseq
        %v664 = vshrl.u32 %v663, 7
        %v665 = vsub.s32 1, %v664
        %v666 = vrot.slane %v638, %v665
        %v667 = vmul.f32 %v657, %v662
        %v668 = vmul.f32 %v657, %v666
        %v669 = vadd.f32 %v653, %v667
        %v670 = vadd.f32 %v654, %v668
        %671 = vset.pattern.permute.xlu0 20
        %672 = vperm.xlu0 %671, %v179
        %v673 = vpop.permute.xlu0 %672
        %v675 = vlaneseq
        %v676 = vshrl.u32 %v675, 7
        %v677 = vsub.s32 2, %v676
        %v678 = vrot.slane %v637, %v677
        %v679 = vlaneseq
        %v680 = vshrl.u32 %v679, 7
        %v681 = vsub.s32 2, %v680
        %v682 = vrot.slane %v638, %v681
        %v683 = vmul.f32 %v673, %v678
        %v684 = vmul.f32 %v673, %v682
        %v685 = vadd.f32 %v669, %v683
        %v686 = vadd.f32 %v670, %v684
        %687 = vrot.lane.b32.xlu0 %v238, 112
        %v688 = vpop.permute.xlu0 %687
        %689 = vrot.lane.b32.xlu0 %v240, 112
        %v690 = vpop.permute.xlu0 %689
        %vm691 = vcmp.lt.s32.totalorder %v187, 112
        %v692 = vsel %vm691, %v688, %v690
        %v693 = vsel %vm691, %v690, %v688
        %v694 = vsel %vm219, 1, 0
        %v695 = vsel %vm220, 1, 0
        %vm696 = vcmp.eq.s32.totalorder %v694, 1
        %vm697 = vcmp.eq.s32.totalorder %v695, 1
        %v698 = vsel %vm696, %v692, 0.0
        %v699 = vsel %vm697, %v693, 0.0
        %700 = vset.pattern.permute.xlu0 21
        %701 = vperm.xlu0 %700, %v179
        %v702 = vpop.permute.xlu0 %701
        %v704 = vlaneseq
        %v705 = vshrl.u32 %v704, 7
        %v706 = vsub.s32 0, %v705
        %v707 = vrot.slane %v698, %v706
        %v708 = vlaneseq
        %v709 = vshrl.u32 %v708, 7
        %v710 = vsub.s32 0, %v709
        %v711 = vrot.slane %v699, %v710
        %v712 = vmul.f32 %v702, %v707
        %v713 = vmul.f32 %v702, %v711
        %v714 = vadd.f32 %v685, %v712
        %v715 = vadd.f32 %v686, %v713
        %716 = vset.pattern.permute.xlu0 22
        %717 = vperm.xlu0 %716, %v179
        %v718 = vpop.permute.xlu0 %717
        %v720 = vlaneseq
        %v721 = vshrl.u32 %v720, 7
        %v722 = vsub.s32 1, %v721
        %v723 = vrot.slane %v698, %v722
        %v724 = vlaneseq
        %v725 = vshrl.u32 %v724, 7
        %v726 = vsub.s32 1, %v725
        %v727 = vrot.slane %v699, %v726
        %v728 = vmul.f32 %v718, %v723
        %v729 = vmul.f32 %v718, %v727
        %v730 = vadd.f32 %v714, %v728
        %v731 = vadd.f32 %v715, %v729
        %732 = vset.pattern.permute.xlu0 23
        %733 = vperm.xlu0 %732, %v179
        %v734 = vpop.permute.xlu0 %733
        %v736 = vlaneseq
        %v737 = vshrl.u32 %v736, 7
        %v738 = vsub.s32 2, %v737
        %v739 = vrot.slane %v698, %v738
        %v740 = vlaneseq
        %v741 = vshrl.u32 %v740, 7
        %v742 = vsub.s32 2, %v741
        %v743 = vrot.slane %v699, %v742
        %v744 = vmul.f32 %v734, %v739
        %v745 = vmul.f32 %v734, %v743
        %v746 = vadd.f32 %v730, %v744
        %v747 = vadd.f32 %v731, %v745
        %748 = vrot.lane.b32.xlu0 %v238, 111
        %v749 = vpop.permute.xlu0 %748
        %750 = vrot.lane.b32.xlu0 %v240, 111
        %v751 = vpop.permute.xlu0 %750
        %vm752 = vcmp.lt.s32.totalorder %v187, 111
        %v753 = vsel %vm752, %v749, %v751
        %v754 = vsel %vm752, %v751, %v749
        %v755 = vsel %vm227, 1, 0
        %v756 = vsel %vm228, 1, 0
        %vm757 = vcmp.eq.s32.totalorder %v755, 1
        %vm758 = vcmp.eq.s32.totalorder %v756, 1
        %v759 = vsel %vm757, %v753, 0.0
        %v760 = vsel %vm758, %v754, 0.0
        %761 = vset.pattern.permute.xlu0 24
        %762 = vperm.xlu0 %761, %v179
        %v763 = vpop.permute.xlu0 %762
        %v765 = vlaneseq
        %v766 = vshrl.u32 %v765, 7
        %v767 = vsub.s32 0, %v766
        %v768 = vrot.slane %v759, %v767
        %v769 = vlaneseq
        %v770 = vshrl.u32 %v769, 7
        %v771 = vsub.s32 0, %v770
        %v772 = vrot.slane %v760, %v771
        %v773 = vmul.f32 %v763, %v768
        %v774 = vmul.f32 %v763, %v772
        %v775 = vadd.f32 %v746, %v773
        %v776 = vadd.f32 %v747, %v774
        %777 = vset.pattern.permute.xlu0 25
        %778 = vperm.xlu0 %777, %v179
        %v779 = vpop.permute.xlu0 %778
        %v781 = vlaneseq
        %v782 = vshrl.u32 %v781, 7
        %v783 = vsub.s32 1, %v782
        %v784 = vrot.slane %v759, %v783
        %v785 = vlaneseq
        %v786 = vshrl.u32 %v785, 7
        %v787 = vsub.s32 1, %v786
        %v788 = vrot.slane %v760, %v787
        %v789 = vmul.f32 %v779, %v784
        %v790 = vmul.f32 %v779, %v788
        %v791 = vadd.f32 %v775, %v789
        %v792 = vadd.f32 %v776, %v790
        %793 = vset.pattern.permute.xlu0 26
        %794 = vperm.xlu0 %793, %v179
        %v795 = vpop.permute.xlu0 %794
        %v797 = vlaneseq
        %v798 = vshrl.u32 %v797, 7
        %v799 = vsub.s32 2, %v798
        %v800 = vrot.slane %v759, %v799
        %v801 = vlaneseq
        %v802 = vshrl.u32 %v801, 7
        %v803 = vsub.s32 2, %v802
        %v804 = vrot.slane %v760, %v803
        %v805 = vmul.f32 %v795, %v800
        %v806 = vmul.f32 %v795, %v804
        %v807 = vadd.f32 %v791, %v805
        %v808 = vadd.f32 %v792, %v806
        %v809 = vmax.f32 %v807, 0.0
        %v810 = vmax.f32 %v808, 0.0
        %s811 = smul.addr %s235, 8
        %s812 = scalar_lea.vmem %s177, %s811
        %813 = vst [vmem:[%s812] sm:$0xff] %v809
        %814 = vst [vmem:[%s812 + $0x8] sm:$0xff] %v810
      $region37: #{model_forward.1} parent=31 // loop_footer
        %s234 = sadd.s32 1, %s230
      $region38: #{model_forward.1} parent=31 // loop_footer_branch
        %229 = sbr.rel target = $region34
      $region39: #{model_forward.1} parent=31 // loop_exit
        _
      %s815 = smul.u32 2, %s14
      %p816 = scmp.lt.s32.totalorder %s815, 3
      %s817 = scalar_select %p816, %s815, 3
      %s818 = smul.addr %s817, 2
      %s819 = smul.addr %s818, 8
      %s820 = scalar_lea.vmem %s3, %s819
      // Predicated region
      $region40: #{model_forward.1} parent=31 // pred_check
        %p821 = pneg %p100
      $region41: #{model_forward.1} parent=31 // pred_check_branch
        %823 = sbr.rel (%p821) target = $region43
      $region42: #{model_forward.1} parent=31 // pred_region
        %s824 = smul.u32 2, %s14
      $region43: #{model_forward.1} parent=31 // pred_fallthru
        _
    $region32: #{model_forward.1} parent=5 // pred_fallthru
      _
    %p825 = scmp.le.s32.totalorder 2, %s9
    // Predicated region
    $region44: #{model_forward.1} parent=5 // pred_check
      %p826 = pneg %p825
    $region45: #{model_forward.1} parent=5 // pred_check_branch
      %828 = sbr.rel (%p826) target = $region47
    $region46: #{model_forward.1} parent=5 // pred_region
      %s829 = ssub.s32 %s9, 2
      // Predicated region
      $region48: #{model_forward.1} parent=46 // pred_check
        %p830 = pneg %p106
      $region49: #{model_forward.1} parent=46 // pred_check_branch
        %832 = sbr.rel (%p830) target = $region51
      $region50: #{model_forward.1} parent=46 // pred_region
        %s833 = smul.u32 2, %s15
        %p834 = scmp.lt.s32.totalorder %s833, 3
        %s835 = scalar_select %p834, %s833, 3
        %s836 = smul.addr %s835, 2
        %s837 = smul.addr %s836, 8
        %s838 = scalar_lea.vmem %s3, %s837
      $region51: #{model_forward.1} parent=46 // pred_fallthru
        _
    $region47: #{model_forward.1} parent=5 // pred_fallthru
      _
  $region6: #{model_forward.1} parent=0 // loop_footer
    %s13 = sadd.s32 1, %s9
  $region7: #{model_forward.1} parent=0 // loop_footer_branch
    %8 = sbr.rel target = $region3
  $region8: #{model_forward.1} parent=0 // loop_exit
    _

</llo_original>
